<compile_context>
chip_gen: v7x
topology: tpu7x:2x2x1
jax: 0.10.0
libtpu: 0.0.40
codegen_flags: <defaults>
</compile_context>

<pallas_src>
import functools

import jax
import jax.numpy as jnp
from jax import lax
from jax.experimental import pallas as pl
from jax.experimental.pallas import tpu as pltpu


def _pick_tile(n, target):
    """Largest tile <= target that divides n and is a multiple of 8 (else n)."""
    if n <= target:
        return n
    for t in range(target, 7, -1):
        if n % t == 0 and t % 8 == 0:
            return t
    return n


# ----------------------- 1) per-head QKV projection ---------------------------

def _qkv_proj_kernel(x_ref, w_ref, q_ref, k_ref, v_ref):
    # x_ref: (1, ts, C) ; w_ref: (3, 1, C, D) ; q/k/v_ref: (1, 1, ts, D)
    x = x_ref[0]
    q_ref[0, 0] = jnp.dot(x, w_ref[0, 0],
                          preferred_element_type=jnp.float32).astype(q_ref.dtype)
    k_ref[0, 0] = jnp.dot(x, w_ref[1, 0],
                          preferred_element_type=jnp.float32).astype(k_ref.dtype)
    v_ref[0, 0] = jnp.dot(x, w_ref[2, 0],
                          preferred_element_type=jnp.float32).astype(v_ref.dtype)


# ----------------------- 2) flash attention (online softmax) ------------------

def _flash_attn_kernel(q_ref, k_ref, v_ref, o_ref, m_sc, l_sc, acc_sc):
    ki = pl.program_id(3)

    @pl.when(ki == 0)
    def _():
        m_sc[...] = jnp.full_like(m_sc, -jnp.inf)
        l_sc[...] = jnp.zeros_like(l_sc)
        acc_sc[...] = jnp.zeros_like(acc_sc)

    q = q_ref[0, 0]                      # (tq, D), scale already folded in
    k = k_ref[0, 0]                      # (tk, D)
    v = v_ref[0, 0]                      # (tk, D)

    # scores: contract q and k on D directly (no k.T / XLU relayout)
    s = lax.dot_general(q, k, (((1,), (1,)), ((), ())),
                        preferred_element_type=jnp.float32)      # (tq, tk)

    m_prev = m_sc[...]
    m_new = jnp.maximum(m_prev, jnp.max(s, axis=-1, keepdims=True))
    alpha = jnp.exp(m_prev - m_new)
    p = jnp.exp(s - m_new)
    l_sc[...] = alpha * l_sc[...] + jnp.sum(p, axis=-1, keepdims=True)
    acc_sc[...] = alpha * acc_sc[...] + jnp.dot(
        p.astype(v.dtype), v, preferred_element_type=jnp.float32)
    m_sc[...] = m_new

    @pl.when(ki == pl.num_programs(3) - 1)
    def _():
        inv_l = pl.reciprocal(l_sc[...], approx=True)            # EUP, frees VALU
        o_ref[0, 0] = (acc_sc[...] * inv_l).astype(o_ref.dtype)


# ----------------------- 3) output projection + bias --------------------------

def _proj_kernel(x_ref, w_ref, b_ref, o_ref):
    out = jnp.dot(x_ref[0], w_ref[...], preferred_element_type=jnp.float32)
    o_ref[0] = (out + b_ref[0].astype(jnp.float32)).astype(o_ref.dtype)


# ----------------------- wrapper ----------------------------------------------

def attention_forward(x, w_qkv, w_proj, b_proj, *, num_heads,
                      q_tile=256, kv_tile=256, seq_tile=256):
    """x: (B, N, C); w_qkv: (3C, C); w_proj: (C, C); b_proj: (C,).

    Weight shapes follow torch nn.Linear (out_features, in_features); the wrapper
    re-lays them out (layout plumbing) into per-head lane-dense slabs.
    """
    B, N, C = x.shape
    H = num_heads
    D = C // H
    scale = D ** (-0.5)
    dtype = x.dtype

    # Per-head weight slabs (3, H, C, D); softmax scale folded into Wq once here.
    w_qkv = jnp.asarray(w_qkv)
    wq = w_qkv[:C].reshape(H, D, C) * scale
    wk = w_qkv[C:2 * C].reshape(H, D, C)
    wv = w_qkv[2 * C:].reshape(H, D, C)
    w_heads = jnp.stack([wq, wk, wv], axis=0).transpose(0, 1, 3, 2).astype(dtype)
    wproj_t = jnp.asarray(w_proj).T.astype(dtype)                 # (C, C)
    bproj_2d = jnp.asarray(b_proj).reshape(1, C).astype(jnp.float32)

    ts = _pick_tile(N, seq_tile)
    tq = _pick_tile(N, q_tile)
    tk = _pick_tile(N, kv_tile)

    # --- 1) QKV projection -----------------------------------------------------
    qkv_shape = jax.ShapeDtypeStruct((B, H, N, D), dtype)
    q, k, v = pl.pallas_call(
        _qkv_proj_kernel,
        out_shape=(qkv_shape, qkv_shape, qkv_shape),
        grid_spec=pltpu.PrefetchScalarGridSpec(
            num_scalar_prefetch=0,
            grid=(B, H, N // ts),
            in_specs=[
                pl.BlockSpec((1, ts, C), lambda b, h, i: (b, i, 0)),
                pl.BlockSpec((3, 1, C, D), lambda b, h, i: (0, h, 0, 0)),
            ],
            out_specs=(
                pl.BlockSpec((1, 1, ts, D), lambda b, h, i: (b, h, i, 0)),
                pl.BlockSpec((1, 1, ts, D), lambda b, h, i: (b, h, i, 0)),
                pl.BlockSpec((1, 1, ts, D), lambda b, h, i: (b, h, i, 0)),
            ),
        ),
        compiler_params=pltpu.CompilerParams(
            dimension_semantics=("parallel", "parallel", "parallel"),
            vmem_limit_bytes=64 * 1024 * 1024),
    )(x, w_heads)

    # --- 2) flash attention over KV tiles ---------------------------------------
    ctx = pl.pallas_call(
        _flash_attn_kernel,
        out_shape=jax.ShapeDtypeStruct((B, H, N, D), dtype),
        grid_spec=pltpu.PrefetchScalarGridSpec(
            num_scalar_prefetch=0,
            grid=(B, H, N // tq, N // tk),
            in_specs=[
                pl.BlockSpec((1, 1, tq, D), lambda b, h, qi, ki: (b, h, qi, 0)),
                pl.BlockSpec((1, 1, tk, D), lambda b, h, qi, ki: (b, h, ki, 0)),
                pl.BlockSpec((1, 1, tk, D), lambda b, h, qi, ki: (b, h, ki, 0)),
            ],
            out_specs=pl.BlockSpec((1, 1, tq, D), lambda b, h, qi, ki: (b, h, qi, 0)),
            scratch_shapes=[
                pltpu.VMEM((tq, 1), jnp.float32),   # running max
                pltpu.VMEM((tq, 1), jnp.float32),   # running denominator
                pltpu.VMEM((tq, D), jnp.float32),   # output accumulator
            ],
        ),
        compiler_params=pltpu.CompilerParams(
            dimension_semantics=("parallel", "parallel", "parallel", "arbitrary"),
            vmem_limit_bytes=64 * 1024 * 1024),
    )(q, k, v)

    # merge heads: (B, H, N, D) -> (B, N, C)  (layout plumbing outside the kernel)
    ctx = ctx.transpose(0, 2, 1, 3).reshape(B, N, C)

    # --- 3) output projection + bias ---------------------------------------------
    out = pl.pallas_call(
        _proj_kernel,
        out_shape=jax.ShapeDtypeStruct((B, N, C), x.dtype),
        grid_spec=pltpu.PrefetchScalarGridSpec(
            num_scalar_prefetch=0,
            grid=(B, N // ts),
            in_specs=[
                pl.BlockSpec((1, ts, C), lambda b, i: (b, i, 0)),
                pl.BlockSpec((C, C), lambda b, i: (0, 0)),
                pl.BlockSpec((1, C), lambda b, i: (0, 0)),
            ],
            out_specs=pl.BlockSpec((1, ts, C), lambda b, i: (b, i, 0)),
        ),
        compiler_params=pltpu.CompilerParams(
            dimension_semantics=("parallel", "parallel"),
            vmem_limit_bytes=64 * 1024 * 1024),
    )(ctx, wproj_t, bproj_2d)

    return out


def attention_reference(x, w_qkv, w_proj, b_proj, *, num_heads):
    """Pure-JAX reference mirroring the PyTorch _naive_attn (f32)."""
    B, N, C = x.shape
    D = C // num_heads
    scale = D ** (-0.5)
    qkv = jnp.einsum("bnc,oc->bno", x, w_qkv)                  # (B, N, 3C), no qkv bias
    qkv = qkv.reshape(B, N, 3, num_heads, D).transpose(2, 0, 3, 1, 4)
    q, k, v = qkv[0], qkv[1], qkv[2]                           # (B, H, N, D)
    attn = jnp.einsum("bhnd,bhmd->bhnm", q * scale, k)
    attn = jax.nn.softmax(attn, axis=-1)
    ctx = jnp.einsum("bhnm,bhmd->bhnd", attn, v)               # (B, H, N, D)
    ctx = ctx.transpose(0, 2, 1, 3).reshape(B, N, C)
    return jnp.einsum("bnc,oc->bno", ctx, w_proj) + b_proj


# TODO(synk): qk_normalization / flash-attn / dropout branches of the module are
# config-disabled by default and are not implemented here (Identity / no-op).

if __name__ == "__main__":
    # Small config consistent with the module: dim=32, num_heads=4, seq=8, batch=2
    B, N, C, H = 2, 8, 32, 4

    key = jax.random.PRNGKey(0)
    kx, kq, kp, kb = jax.random.split(key, 4)
    x = jax.random.normal(kx, (B, N, C), dtype=jnp.float32)
    # Deterministic synthetic parameters (torch nn.Linear weight layout: (out, in))
    w_qkv = jax.random.normal(kq, (3 * C, C), dtype=jnp.float32) * 0.05   # qkv_bias=False
    w_proj = jax.random.normal(kp, (C, C), dtype=jnp.float32) * 0.05
    b_proj = jax.random.normal(kb, (C,), dtype=jnp.float32) * 0.05

    ref = attention_reference(x, w_qkv, w_proj, b_proj, num_heads=H)

    # f32 path (exact-ish; approx reciprocal is the only approximation)
    out = attention_forward(x, w_qkv, w_proj, b_proj, num_heads=H)
    out = jax.block_until_ready(out)
    assert out.shape == (B, N, C)
    assert jnp.allclose(out, ref, atol=5e-3, rtol=5e-3), "f32 mismatch vs reference"

    # bf16 fast path (bf16 MXU inputs, f32 accumulation) — loose sanity check
    out_bf16 = attention_forward(x.astype(jnp.bfloat16), w_qkv, w_proj, b_proj,
                                 num_heads=H)
    out_bf16 = jax.block_until_ready(out_bf16)
    assert out_bf16.dtype == jnp.bfloat16
    assert jnp.allclose(out_bf16.astype(jnp.float32), ref, atol=1e-1, rtol=1e-1), \
        "bf16 mismatch vs reference"

    print("KERNEL_OK")
</pallas_src>

<mosaic_0001>
module attributes {stable_mosaic.version = 11 : i64} {
  func.func @_qkv_proj_kernel(%arg0: i32, %arg1: i32, %arg2: i32, %arg3: memref<1x8x32xf32, #tpu.memory_space<vmem>>, %arg4: memref<3x1x32x8xf32, #tpu.memory_space<vmem>>, %arg5: memref<1x1x8x8xf32, #tpu.memory_space<vmem>>, %arg6: memref<1x1x8x8xf32, #tpu.memory_space<vmem>>, %arg7: memref<1x1x8x8xf32, #tpu.memory_space<vmem>>) attributes {dimension_semantics = [#tpu.dimension_semantics<parallel>, #tpu.dimension_semantics<parallel>, #tpu.dimension_semantics<parallel>], iteration_bounds = array<i64: 2, 4, 1>, scalar_prefetch = 0 : i64, scratch_operands = 0 : i64, tpu.core_type = #tpu.core_type<tc>, window_params = [{transform_indices = @transform_0, window_bounds = array<i64: 1, 8, 32>}, {transform_indices = @transform_1, window_bounds = array<i64: 3, 1, 32, 8>}, {transform_indices = @transform_2, window_bounds = array<i64: 1, 1, 8, 8>}, {transform_indices = @transform_3, window_bounds = array<i64: 1, 1, 8, 8>}, {transform_indices = @transform_4, window_bounds = array<i64: 1, 1, 8, 8>}]} {
    %c0 = arith.constant 0 : index
    %c0_0 = arith.constant 0 : index
    %c0_1 = arith.constant 0 : index
    %0 = vector.load %arg3[%c0, %c0_0, %c0_1] : memref<1x8x32xf32, #tpu.memory_space<vmem>>, vector<1x8x32xf32>
    %1 = vector.shape_cast %0 : vector<1x8x32xf32> to vector<8x32xf32>
    %c0_2 = arith.constant 0 : index
    %c0_3 = arith.constant 0 : index
    %c0_4 = arith.constant 0 : index
    %c0_5 = arith.constant 0 : index
    %2 = vector.load %arg4[%c0_2, %c0_3, %c0_4, %c0_5] : memref<3x1x32x8xf32, #tpu.memory_space<vmem>>, vector<1x1x32x8xf32>
    %3 = vector.shape_cast %2 : vector<1x1x32x8xf32> to vector<32x8xf32>
    %cst = arith.constant dense<0.000000e+00> : vector<8x8xf32>
    %4 = tpu.matmul %1, %3, %cst {dimension_numbers = #tpu.dot_dimension_numbers<[1], [0], [0], [1], [0, 0, 1, 1], [], []>} : vector<8x32xf32>, vector<32x8xf32>, vector<8x8xf32> -> vector<8x8xf32>
    %c0_6 = arith.constant 0 : index
    %c0_7 = arith.constant 0 : index
    %c0_8 = arith.constant 0 : index
    %c0_9 = arith.constant 0 : index
    %5 = vector.load %arg5[%c0_6, %c0_7, %c0_8, %c0_9] : memref<1x1x8x8xf32, #tpu.memory_space<vmem>>, vector<1x1x8x8xf32>
    %6 = vector.shape_cast %5 : vector<1x1x8x8xf32> to vector<8x8xf32>
    %7 = vector.shape_cast %4 : vector<8x8xf32> to vector<1x1x8x8xf32>
    tpu.vector_store %arg5[%c0_6, %c0_7, %c0_8, %c0_9], %7 {strides = array<i32>} : memref<1x1x8x8xf32, #tpu.memory_space<vmem>>, vector<1x1x8x8xf32>,
    %c1 = arith.constant 1 : index
    %c0_10 = arith.constant 0 : index
    %c0_11 = arith.constant 0 : index
    %c0_12 = arith.constant 0 : index
    %8 = vector.load %arg4[%c1, %c0_10, %c0_11, %c0_12] : memref<3x1x32x8xf32, #tpu.memory_space<vmem>>, vector<1x1x32x8xf32>
    %9 = vector.shape_cast %8 : vector<1x1x32x8xf32> to vector<32x8xf32>
    %cst_13 = arith.constant dense<0.000000e+00> : vector<8x8xf32>
    %10 = tpu.matmul %1, %9, %cst_13 {dimension_numbers = #tpu.dot_dimension_numbers<[1], [0], [0], [1], [0, 0, 1, 1], [], []>} : vector<8x32xf32>, vector<32x8xf32>, vector<8x8xf32> -> vector<8x8xf32>
    %c0_14 = arith.constant 0 : index
    %c0_15 = arith.constant 0 : index
    %c0_16 = arith.constant 0 : index
    %c0_17 = arith.constant 0 : index
    %11 = vector.load %arg6[%c0_14, %c0_15, %c0_16, %c0_17] : memref<1x1x8x8xf32, #tpu.memory_space<vmem>>, vector<1x1x8x8xf32>
    %12 = vector.shape_cast %11 : vector<1x1x8x8xf32> to vector<8x8xf32>
    %13 = vector.shape_cast %10 : vector<8x8xf32> to vector<1x1x8x8xf32>
    tpu.vector_store %arg6[%c0_14, %c0_15, %c0_16, %c0_17], %13 {strides = array<i32>} : memref<1x1x8x8xf32, #tpu.memory_space<vmem>>, vector<1x1x8x8xf32>,
    %c2 = arith.constant 2 : index
    %c0_18 = arith.constant 0 : index
    %c0_19 = arith.constant 0 : index
    %c0_20 = arith.constant 0 : index
    %14 = vector.load %arg4[%c2, %c0_18, %c0_19, %c0_20] : memref<3x1x32x8xf32, #tpu.memory_space<vmem>>, vector<1x1x32x8xf32>
    %15 = vector.shape_cast %14 : vector<1x1x32x8xf32> to vector<32x8xf32>
    %cst_21 = arith.constant dense<0.000000e+00> : vector<8x8xf32>
    %16 = tpu.matmul %1, %15, %cst_21 {dimension_numbers = #tpu.dot_dimension_numbers<[1], [0], [0], [1], [0, 0, 1, 1], [], []>} : vector<8x32xf32>, vector<32x8xf32>, vector<8x8xf32> -> vector<8x8xf32>
    %c0_22 = arith.constant 0 : index
    %c0_23 = arith.constant 0 : index
    %c0_24 = arith.constant 0 : index
    %c0_25 = arith.constant 0 : index
    %17 = vector.load %arg7[%c0_22, %c0_23, %c0_24, %c0_25] : memref<1x1x8x8xf32, #tpu.memory_space<vmem>>, vector<1x1x8x8xf32>
    %18 = vector.shape_cast %17 : vector<1x1x8x8xf32> to vector<8x8xf32>
    %19 = vector.shape_cast %16 : vector<8x8xf32> to vector<1x1x8x8xf32>
    tpu.vector_store %arg7[%c0_22, %c0_23, %c0_24, %c0_25], %19 {strides = array<i32>} : memref<1x1x8x8xf32, #tpu.memory_space<vmem>>, vector<1x1x8x8xf32>,
    return
  }
  func.func @transform_0(%arg0: i32, %arg1: i32, %arg2: i32) -> (i32, i32, i32) {
    %c0_i32 = arith.constant 0 : i32
    %c0_i32_0 = arith.constant 0 : i32
    return %arg0, %arg2, %c0_i32 : i32, i32, i32
  }
  func.func @transform_1(%arg0: i32, %arg1: i32, %arg2: i32) -> (i32, i32, i32, i32) {
    %c0_i32 = arith.constant 0 : i32
    %c0_i32_0 = arith.constant 0 : i32
    %c0_i32_1 = arith.constant 0 : i32
    %c0_i32_2 = arith.constant 0 : i32
    return %c0_i32, %arg1, %c0_i32_0, %c0_i32_1 : i32, i32, i32, i32
  }
  func.func @transform_2(%arg0: i32, %arg1: i32, %arg2: i32) -> (i32, i32, i32, i32) {
    %c0_i32 = arith.constant 0 : i32
    %c0_i32_0 = arith.constant 0 : i32
    return %arg0, %arg1, %arg2, %c0_i32 : i32, i32, i32, i32
  }
  func.func @transform_3(%arg0: i32, %arg1: i32, %arg2: i32) -> (i32, i32, i32, i32) {
    %c0_i32 = arith.constant 0 : i32
    %c0_i32_0 = arith.constant 0 : i32
    return %arg0, %arg1, %arg2, %c0_i32 : i32, i32, i32, i32
  }
  func.func @transform_4(%arg0: i32, %arg1: i32, %arg2: i32) -> (i32, i32, i32, i32) {
    %c0_i32 = arith.constant 0 : i32
    %c0_i32_0 = arith.constant 0 : i32
    return %arg0, %arg1, %arg2, %c0_i32 : i32, i32, i32, i32
  }
}

</mosaic_0001>

<llo_original>
// kernel: tpu_custom_call.1
$region0: #{tpu_custom_call.1}
  #allocation0 [shape = 'u32[]', space=smem, size = 0x4, offset = 0x4, fixed_abs, tag = 'smem constant byte address 0x4 - core index']
  #allocation1 [shape = 'u32[144,128]{1,0:T(1,128)}', space=vmem, size = 0x12000, scoped, tag = 'internal scratch']
  #allocation11 [shape = 's32[]', space=sflag, size = 0x4, offset = 0, fixed_abs, tag = 'sflag constant byte address 0x0 - dummy sync flag']
  %s0 = inlined_call_operand.hbm [shape: f32[2,8,32], index: 0, kind: input, shape index: {}]
  %s1 = inlined_call_operand.hbm [shape: f32[3,4,32,8], index: 1, kind: input, shape index: {}]
  %s2 = inlined_call_operand.hbm [shape: f32[2,4,8,8], index: 2, kind: output, shape index: {0}]
  %s3 = inlined_call_operand.hbm [shape: f32[2,4,8,8], index: 3, kind: output, shape index: {1}]
  %s4 = inlined_call_operand.hbm [shape: f32[2,4,8,8], index: 4, kind: output, shape index: {2}]
  %5 = xla_tuple %s2, %s3, %s4
  %s6 = sld [smem:[#allocation0]]
  $region65: #{tpu_custom_call.1} parent=0
    _
  %s8 = ssub.s32 1, %s6
  %s9 = scalar_select 0, %s8, %s6
  $region1: #{tpu_custom_call.1} parent=0
    #allocation2 [shape = 'u8[8192]{0}', space=vmem, size = 0x2000, scoped, tag = 'input window, operand 0']
    #allocation3 [shape = 's32[2]{0}', space=sflag, size = 0x8, scoped, tag = 'scoped memory for tpu_custom_call.1']
    #allocation4 [shape = 's32[2]{0}', space=sflag, size = 0x8, scoped, tag = 'scoped memory for tpu_custom_call.1']
    #allocation5 [shape = 'u8[98304]{0}', space=vmem, size = 0x18000, scoped, tag = 'input window, operand 1']
    #allocation6 [shape = 's32[2]{0}', space=sflag, size = 0x8, scoped, tag = 'scoped memory for tpu_custom_call.1']
    #allocation7 [shape = 'u8[8192]{0}', space=vmem, size = 0x2000, scoped, tag = 'output window, operand 0']
    #allocation8 [shape = 'u8[8192]{0}', space=vmem, size = 0x2000, scoped, tag = 'output window, operand 1']
    #allocation9 [shape = 's32[2]{0}', space=sflag, size = 0x8, scoped, tag = 'scoped memory for tpu_custom_call.1']
    #allocation10 [shape = 'u8[8192]{0}', space=vmem, size = 0x2000, scoped, tag = 'output window, operand 2']
    %10 = vsyncpa [#allocation3], 0
    %s11 = scalar_lea.sflag [#allocation3], 1
    %12 = vsyncpa %s11, 0
    %13 = vsyncpa [#allocation6], 0
    %s14 = scalar_lea.sflag [#allocation6], 1
    %15 = vsyncpa %s14, 0
    %16 = vsyncpa [#allocation4], 0
    %s17 = scalar_lea.sflag [#allocation4], 1
    %18 = vsyncpa %s17, 0
    %19 = vsyncpa [#allocation9], 0
    %s20 = scalar_lea.sflag [#allocation9], 1
    %21 = vsyncpa %s20, 0
    loop: start=0, step=1, limit=10
    $region2: #{tpu_custom_call.1} parent=1 // loop_pre_header
      _
    $region3: #{tpu_custom_call.1} parent=1 // loop_header
      %s23 = sphi 0, %s27
      %p24 = scmp.ge.s32.totalorder %s23, 10
      %s30 = sphi 0, %s49
      %s31 = sphi 0, %s45
      %s32 = sphi 0, %s41
      %s33 = sphi 0, %s30
      %s34 = sphi 0, %s31
      %s35 = sphi 0, %s32
      %s36 = sphi 0, %s33
      %s37 = sphi 0, %s34
      %s38 = sphi 0, %s35
      %s54 = sphi 0, %s56
      %s57 = sphi 0, %s54
      %s58 = sphi 0, %s57
      %s74 = sphi 0, %s58
      %s80 = sphi 0, %s82
      %s83 = sphi 0, %s80
      %s84 = sphi 0, %s83
      %s100 = sphi 0, %s84
      %s110 = sphi 0, %s112
      %s113 = sphi 0, %s110
      %s114 = sphi 0, %s113
      %s130 = sphi 0, %s114
      %s140 = sphi 0, %s142
      %s143 = sphi 0, %s140
      %s144 = sphi 0, %s143
      %s160 = sphi 0, %s144
      %s170 = sphi 0, %s172
      %s173 = sphi 0, %s170
      %s174 = sphi 0, %s173
      %s190 = sphi 0, %s174
    $region4: #{tpu_custom_call.1} parent=1 // loop_header_branch
      %26 = sbr.rel (%p24) target = $region8
    $region5: #{tpu_custom_call.1} parent=1 // loop_body
      %s28 = ssub.s32 %s23, 1
      %s29 = ssub.s32 %s23, 2
      %s39 = sadd.s32 1, %s32
      %p40 = scmp.ge.s32.totalorder %s39, 1
      %s41 = scalar_select %p40, 0, %s39
      %s42 = sadd.s32 1, %s31
      %s43 = scalar_select %p40, %s42, %s31
      %p44 = scmp.ge.s32.totalorder %s43, 4
      %s45 = scalar_select %p44, 0, %s43
      %s46 = sadd.s32 1, %s30
      %s47 = scalar_select %p44, %s46, %s30
      %p48 = scmp.ge.s32.totalorder %s47, 2
      %s49 = scalar_select %p48, 0, %s47
      %s50 = ssub.s32 %s30, %s49
      %s51 = ssub.s32 %s32, %s41
      %s52 = sor.u32 %s50, %s51
      %p53 = scmp.eq.s32.totalorder %s52, 0
      %s55 = sadd.s32 %s54, 1
      %s56 = scalar_select %p53, %s54, %s55
      %p59 = pneg %p53
      %p60 = scmp.eq.s32.totalorder %s23, 7
      %p61 = por %p59, %p60
      %p62 = scmp.ne.s32.totalorder %s54, %s57
      %p63 = scmp.eq.s32.totalorder %s23, 0
      %p64 = por %p62, %p63
      %p65 = scmp.ne.s32.totalorder %s54, %s57
      %p66 = scmp.eq.s32.totalorder %s28, 7
      %p67 = por %p65, %p66
      %p68 = scmp.ne.s32.totalorder %s57, %s58
      %p69 = scmp.eq.s32.totalorder %s28, 0
      %p70 = por %p68, %p69
      %p71 = scmp.ne.s32.totalorder %s57, %s58
      %p72 = scmp.eq.s32.totalorder %s29, 7
      %p73 = por %p71, %p72
      %p75 = scmp.ne.s32.totalorder %s58, %s74
      %p76 = scmp.eq.s32.totalorder %s29, 0
      %p77 = por %p75, %p76
      %s78 = ssub.s32 %s31, %s45
      %p79 = scmp.eq.s32.totalorder %s78, 0
      %s81 = sadd.s32 %s80, 1
      %s82 = scalar_select %p79, %s80, %s81
      %p85 = pneg %p79
      %p86 = scmp.eq.s32.totalorder %s23, 7
      %p87 = por %p85, %p86
      %p88 = scmp.ne.s32.totalorder %s80, %s83
      %p89 = scmp.eq.s32.totalorder %s23, 0
      %p90 = por %p88, %p89
      %p91 = scmp.ne.s32.totalorder %s80, %s83
      %p92 = scmp.eq.s32.totalorder %s28, 7
      %p93 = por %p91, %p92
      %p94 = scmp.ne.s32.totalorder %s83, %s84
      %p95 = scmp.eq.s32.totalorder %s28, 0
      %p96 = por %p94, %p95
      %p97 = scmp.ne.s32.totalorder %s83, %s84
      %p98 = scmp.eq.s32.totalorder %s29, 7
      %p99 = por %p97, %p98
      %p101 = scmp.ne.s32.totalorder %s84, %s100
      %p102 = scmp.eq.s32.totalorder %s29, 0
      %p103 = por %p101, %p102
      %s104 = ssub.s32 %s30, %s49
      %s105 = ssub.s32 %s31, %s45
      %s106 = sor.u32 %s104, %s105
      %s107 = ssub.s32 %s32, %s41
      %s108 = sor.u32 %s106, %s107
      %p109 = scmp.eq.s32.totalorder %s108, 0
      %s111 = sadd.s32 %s110, 1
      %s112 = scalar_select %p109, %s110, %s111
      %p115 = pneg %p109
      %p116 = scmp.eq.s32.totalorder %s23, 7
      %p117 = por %p115, %p116
      %p118 = scmp.ne.s32.totalorder %s110, %s113
      %p119 = scmp.eq.s32.totalorder %s23, 0
      %p120 = por %p118, %p119
      %p121 = scmp.ne.s32.totalorder %s110, %s113
      %p122 = scmp.eq.s32.totalorder %s28, 7
      %p123 = por %p121, %p122
      %p124 = scmp.ne.s32.totalorder %s113, %s114
      %p125 = scmp.eq.s32.totalorder %s28, 0
      %p126 = por %p124, %p125
      %p127 = scmp.ne.s32.totalorder %s113, %s114
      %p128 = scmp.eq.s32.totalorder %s29, 7
      %p129 = por %p127, %p128
      %p131 = scmp.ne.s32.totalorder %s114, %s130
      %p132 = scmp.eq.s32.totalorder %s29, 0
      %p133 = por %p131, %p132
      %s134 = ssub.s32 %s30, %s49
      %s135 = ssub.s32 %s31, %s45
      %s136 = sor.u32 %s134, %s135
      %s137 = ssub.s32 %s32, %s41
      %s138 = sor.u32 %s136, %s137
      %p139 = scmp.eq.s32.totalorder %s138, 0
      %s141 = sadd.s32 %s140, 1
      %s142 = scalar_select %p139, %s140, %s141
      %p145 = pneg %p139
      %p146 = scmp.eq.s32.totalorder %s23, 7
      %p147 = por %p145, %p146
      %p148 = scmp.ne.s32.totalorder %s140, %s143
      %p149 = scmp.eq.s32.totalorder %s23, 0
      %p150 = por %p148, %p149
      %p151 = scmp.ne.s32.totalorder %s140, %s143
      %p152 = scmp.eq.s32.totalorder %s28, 7
      %p153 = por %p151, %p152
      %p154 = scmp.ne.s32.totalorder %s143, %s144
      %p155 = scmp.eq.s32.totalorder %s28, 0
      %p156 = por %p154, %p155
      %p157 = scmp.ne.s32.totalorder %s143, %s144
      %p158 = scmp.eq.s32.totalorder %s29, 7
      %p159 = por %p157, %p158
      %p161 = scmp.ne.s32.totalorder %s144, %s160
      %p162 = scmp.eq.s32.totalorder %s29, 0
      %p163 = por %p161, %p162
      %s164 = ssub.s32 %s30, %s49
      %s165 = ssub.s32 %s31, %s45
      %s166 = sor.u32 %s164, %s165
      %s167 = ssub.s32 %s32, %s41
      %s168 = sor.u32 %s166, %s167
      %p169 = scmp.eq.s32.totalorder %s168, 0
      %s171 = sadd.s32 %s170, 1
      %s172 = scalar_select %p169, %s170, %s171
      %p175 = pneg %p169
      %p176 = scmp.eq.s32.totalorder %s23, 7
      %p177 = por %p175, %p176
      %p178 = scmp.ne.s32.totalorder %s170, %s173
      %p179 = scmp.eq.s32.totalorder %s23, 0
      %p180 = por %p178, %p179
      %p181 = scmp.ne.s32.totalorder %s170, %s173
      %p182 = scmp.eq.s32.totalorder %s28, 7
      %p183 = por %p181, %p182
      %p184 = scmp.ne.s32.totalorder %s173, %s174
      %p185 = scmp.eq.s32.totalorder %s28, 0
      %p186 = por %p184, %p185
      %p187 = scmp.ne.s32.totalorder %s173, %s174
      %p188 = scmp.eq.s32.totalorder %s29, 7
      %p189 = por %p187, %p188
      %p191 = scmp.ne.s32.totalorder %s174, %s190
      %p192 = scmp.eq.s32.totalorder %s29, 0
      %p193 = por %p191, %p192
      %p194 = scmp.le.s32.totalorder 1, %s23
      %p195 = scmp.lt.s32.totalorder %s23, 9
      %p196 = pnand %p194, %p195
      %p197 = pneg %p196
      // Predicated region
      $region9: #{tpu_custom_call.1} parent=5 // pred_check
        _
      $region10: #{tpu_custom_call.1} parent=5 // pred_check_branch
        %199 = sbr.rel (%p196) target = $region12
      $region11: #{tpu_custom_call.1} parent=5 // pred_region
        %s200 = ssub.s32 %s23, 1
      $region12: #{tpu_custom_call.1} parent=5 // pred_fallthru
        _
      %p201 = scmp.lt.s32.totalorder %s23, 8
      // Predicated region
      $region13: #{tpu_custom_call.1} parent=5 // pred_check
        %p202 = pneg %p201
      $region14: #{tpu_custom_call.1} parent=5 // pred_check_branch
        %204 = sbr.rel (%p202) target = $region16
      $region15: #{tpu_custom_call.1} parent=5 // pred_region
        // Predicated region
        $region17: #{tpu_custom_call.1} parent=15 // pred_check
          %p205 = pneg %p64
        $region18: #{tpu_custom_call.1} parent=15 // pred_check_branch
          %207 = sbr.rel (%p205) target = $region20
        $region19: #{tpu_custom_call.1} parent=15 // pred_region
          %s208 = sand.u32 %s54, 1
          %s209 = scalar_lea.sflag [#allocation3], %s208
          %s210 = sand.u32 %s54, 1
          %s211 = smul.addr %s210, 8
          %s212 = scalar_lea.vmem [#allocation2], %s211
          %s214 = ssub.s32 128, 128
          %215 = vsyncadd %s209, %s214
          %s216 = sadd.s32 %s32, %s30
          %s217 = smul.addr %s216, 128
          %s218 = scalar_lea.hbm %s0, %s217
          %s220 = sshll.u32 %s212, 4
          %s221 = int_to_ptr.vmem [resolvable:$true] %s220
          %223 = dma.hbm_to_vmem [thread:$0]  %s218, 128, %s221, %s209
        $region20: #{tpu_custom_call.1} parent=15 // pred_fallthru
          _
        // Predicated region
        $region21: #{tpu_custom_call.1} parent=15 // pred_check
          %p224 = pneg %p90
        $region22: #{tpu_custom_call.1} parent=15 // pred_check_branch
          %226 = sbr.rel (%p224) target = $region24
        $region23: #{tpu_custom_call.1} parent=15 // pred_region
          #allocation12 [shape = 'u32[6]{0}', space=smem, size = 0x18, scoped, tag = 'DMA stride descriptor']
          %s227 = sand.u32 %s80, 1
          %s228 = scalar_lea.sflag [#allocation6], %s227
          %s229 = sand.u32 %s80, 1
          %s230 = smul.addr %s229, 96
          %s231 = scalar_lea.vmem [#allocation5], %s230
          %s233 = ssub.s32 1536, 1536
          %234 = vsyncadd %s228, %s233
          %s235 = smul.addr %s31, 4
          %s236 = smul.addr %s235, 128
          %s237 = scalar_lea.hbm %s1, %s236
          %s239 = sshll.u32 1, 14
          %s240 = sxor.u32 4294967295, %s239
          %s242 = sld [smem:[#allocation0]]
          %s243 = sadd.s32 2, %s242
          %s245 = sshll.u32 7, 26
          %s246 = sxor.u32 4294967295, %s245
          %s247 = sand.u32 0, %s246
          %s248 = sshll.u32 %s243, 26
          %s249 = sor.u32 %s247, %s248
          %s250 = sshll.u32 %s231, 4
          %s251 = int_to_ptr.vmem [resolvable:$true] %s250
          %257 = sst [smem:[#allocation12]] 2048
          %s258 = scalar_lea.smem [#allocation12], 1
          %259 = sst [smem:[%s258]] 512
          %s260 = scalar_lea.smem [#allocation12], 2
          %261 = sst [smem:[%s260]] 4
          %s262 = scalar_lea.smem [#allocation12], 3
          %263 = sst [smem:[%s262]] 128
          %s264 = scalar_lea.smem [#allocation12], 4
          %265 = sst [smem:[%s264]] 128
          %s266 = scalar_lea.smem [#allocation12], 5
          %267 = sst [smem:[%s266]] 8
          %269 = dma.general %s237, 1536, %s251, %s228, [#allocation11], [#allocation12], %s249, 0
        $region24: #{tpu_custom_call.1} parent=15 // pred_fallthru
          _
      $region16: #{tpu_custom_call.1} parent=5 // pred_fallthru
        _
      %p270 = scmp.le.s32.totalorder 1, %s23
      %p271 = scmp.lt.s32.totalorder %s23, 9
      %p272 = pnand %p270, %p271
      %p273 = pneg %p272
      // Predicated region
      $region25: #{tpu_custom_call.1} parent=5 // pred_check
        _
      $region26: #{tpu_custom_call.1} parent=5 // pred_check_branch
        %275 = sbr.rel (%p272) target = $region28
      $region27: #{tpu_custom_call.1} parent=5 // pred_region
        %s276 = ssub.s32 %s23, 1
        %s277 = sand.u32 %s57, 1
        %s278 = scalar_lea.sflag [#allocation3], %s277
        %s279 = sand.u32 %s57, 1
        %s280 = smul.addr %s279, 8
        %s281 = scalar_lea.vmem [#allocation2], %s280
        // Predicated region
        $region29: #{tpu_custom_call.1} parent=27 // pred_check
          %p282 = pneg %p70
        $region30: #{tpu_custom_call.1} parent=27 // pred_check_branch
          %284 = sbr.rel (%p282) target = $region32
        $region31: #{tpu_custom_call.1} parent=27 // pred_region
          %285 = dma.done %s278, 128
        $region32: #{tpu_custom_call.1} parent=27 // pred_fallthru
          _
        %s286 = sand.u32 %s83, 1
        %s287 = scalar_lea.sflag [#allocation6], %s286
        %s288 = sand.u32 %s83, 1
        %s289 = smul.addr %s288, 96
        %s290 = scalar_lea.vmem [#allocation5], %s289
        // Predicated region
        $region33: #{tpu_custom_call.1} parent=27 // pred_check
          %p291 = pneg %p96
        $region34: #{tpu_custom_call.1} parent=27 // pred_check_branch
          %293 = sbr.rel (%p291) target = $region36
        $region35: #{tpu_custom_call.1} parent=27 // pred_region
          %294 = dma.done %s287, 1536
        $region36: #{tpu_custom_call.1} parent=27 // pred_fallthru
          _
        %s295 = sand.u32 %s57, 1
        %s296 = scalar_lea.sflag [#allocation3], %s295
        %s297 = sand.u32 %s57, 1
        %s298 = smul.addr %s297, 8
        %s299 = scalar_lea.vmem [#allocation2], %s298
        %p300 = pneg %p70
        %p301 = pneg %p67
        %s302 = sand.u32 %s83, 1
        %s303 = scalar_lea.sflag [#allocation6], %s302
        %s304 = sand.u32 %s83, 1
        %s305 = smul.addr %s304, 96
        %s306 = scalar_lea.vmem [#allocation5], %s305
        %p307 = pneg %p96
        %p308 = pneg %p93
        %p309 = pneg %p126
        %p310 = pneg %p123
        %s311 = sand.u32 %s113, 1
        %s312 = scalar_lea.sflag [#allocation4], %s311
        %s313 = sand.u32 %s113, 1
        %s314 = smul.addr %s313, 8
        %s315 = scalar_lea.vmem [#allocation7], %s314
        %p316 = pneg %p156
        %p317 = pneg %p153
        %s318 = sand.u32 %s28, 1
        %s319 = scalar_lea.sflag [#allocation9], %s318
        %s320 = sand.u32 %s143, 1
        %s321 = smul.addr %s320, 8
        %s322 = scalar_lea.vmem [#allocation8], %s321
        %p323 = pneg %p186
        %p324 = pneg %p183
        %s325 = sand.u32 %s28, 1
        %s326 = scalar_lea.sflag [#allocation9], %s325
        %s327 = sand.u32 %s173, 1
        %s328 = smul.addr %s327, 8
        %s329 = scalar_lea.vmem [#allocation10], %s328
        %v330 = vld [vmem:[%s281] sm:$0xff]
        %v331 = vld [vmem:[%s290] sm:$0xff]
        %v332 = vld [vmem:[%s290 + $0x8] sm:$0xff]
        %v333 = vld [vmem:[%s290 + $0x10] sm:$0xff]
        %v334 = vld [vmem:[%s290 + $0x18] sm:$0xff]
        %vm335 = vcmask 261120
        %v337 = vsel %vm335, %v330, 0
        %339 = vmatprep.subr.mxu0 0.0
        %340 = vmatpush1.msra.mxu0 %v331
        %341 = vmatprep.subr.mxu0 0.0
        %342 = vmatpush1.msra.mxu0 %v332
        %343 = vmatprep.subr.mxu0 0.0
        %344 = vmatpush1.msra.mxu0 %v333
        %345 = vmatprep.subr.mxu0 0.0
        %346 = vmatpush1.msra.mxu0 %v334
        %347 = vmatprep.subr.mxu0 0.0
        %348 = vmatpush1.msra.mxu0 0.0
        %349 = vmatprep.subr.mxu0 0.0
        %350 = vmatpush1.msra.mxu0 0.0
        %351 = vmatprep.subr.mxu0 0.0
        %352 = vmatpush1.msra.mxu0 0.0
        %353 = vmatprep.subr.mxu0 0.0
        %354 = vmatpush1.msra.mxu0 0.0
        %355 = vmatprep.subr.mxu0 0.0
        %356 = vmatpush1.msra.mxu0 0.0
        %357 = vmatprep.subr.mxu0 0.0
        %358 = vmatpush1.msra.mxu0 0.0
        %359 = vmatprep.subr.mxu0 0.0
        %360 = vmatpush1.msra.mxu0 0.0
        %361 = vmatprep.subr.mxu0 0.0
        %362 = vmatpush1.msra.mxu0 0.0
        %363 = vmatprep.subr.mxu0 0.0
        %364 = vmatpush1.msra.mxu0 0.0
        %365 = vmatprep.subr.mxu0 0.0
        %366 = vmatpush1.msra.mxu0 0.0
        %367 = vmatprep.subr.mxu0 0.0
        %368 = vmatpush1.msra.mxu0 0.0
        %369 = vmatprep.subr.mxu0 0.0
        %370 = vmatpush1.msra.mxu0 0.0
        %371 = vmatprep.subr.mxu0 0.0
        %372 = vmatpush1.msra.mxu0 0.0
        %373 = vmatprep.subr.mxu0 0.0
        %374 = vmatpush1.msra.mxu0 0.0
        %375 = vmatprep.subr.mxu0 0.0
        %376 = vmatpush1.msra.mxu0 0.0
        %377 = vmatprep.subr.mxu0 0.0
        %378 = vmatpush1.msra.mxu0 0.0
        %379 = vmatprep.subr.mxu0 0.0
        %380 = vmatpush1.msra.mxu0 0.0
        %381 = vmatprep.subr.mxu0 0.0
        %382 = vmatpush1.msra.mxu0 0.0
        %383 = vmatprep.subr.mxu0 0.0
        %384 = vmatpush1.msra.mxu0 0.0
        %385 = vmatprep.subr.mxu0 0.0
        %386 = vmatpush1.msra.mxu0 0.0
        %387 = vmatprep.subr.mxu0 0.0
        %388 = vmatpush1.msra.mxu0 0.0
        %389 = vmatprep.subr.mxu0 0.0
        %390 = vmatpush1.msra.mxu0 0.0
        %391 = vmatprep.subr.mxu0 0.0
        %392 = vmatpush1.msra.mxu0 0.0
        %393 = vmatprep.subr.mxu0 0.0
        %394 = vmatpush1.msra.mxu0 0.0
        %395 = vmatprep.subr.mxu0 0.0
        %396 = vmatpush1.msra.mxu0 0.0
        %397 = vmatprep.subr.mxu0 0.0
        %398 = vmatpush1.msra.mxu0 0.0
        %399 = vmatprep.subr.mxu0 0.0
        %400 = vmatpush1.msra.mxu0 0.0
        %401 = vmatprep.subr.mxu0 0.0
        %402 = vmatpush1.msra.mxu0 0.0
        %403 = vmatprep.mubr.f32.mxu0 0.0
        %404 = vmatmul.mubr.f32.gmra.mrb[0].mxu0 %v337
        %v405 = vpop.f32.mrb[0].mxu0
        %v406 = vadd.f32 0.0, %v405
        %v407 = vpop.f32.mrb[0].mxu0
        %408 = vdwg.mxu0
        %vm409 = vcmask 64512
        %410 = vst.msk [vmem:[%s315] sm:$0xff] %vm409, %v406
        %s411 = scalar_lea.vmem %s290, 32 [#allocation5]
        %v412 = vld [vmem:[%s411] sm:$0xff]
        %v413 = vld [vmem:[%s411 + $0x8] sm:$0xff]
        %v414 = vld [vmem:[%s411 + $0x10] sm:$0xff]
        %v415 = vld [vmem:[%s411 + $0x18] sm:$0xff]
        %416 = vmatprep.subr.mxu0 0.0
        %417 = vmatpush1.msra.mxu0 %v412
        %418 = vmatprep.subr.mxu0 0.0
        %419 = vmatpush1.msra.mxu0 %v413
        %420 = vmatprep.subr.mxu0 0.0
        %421 = vmatpush1.msra.mxu0 %v414
        %422 = vmatprep.subr.mxu0 0.0
        %423 = vmatpush1.msra.mxu0 %v415
        %424 = vmatprep.subr.mxu0 0.0
        %425 = vmatpush1.msra.mxu0 0.0
        %426 = vmatprep.subr.mxu0 0.0
        %427 = vmatpush1.msra.mxu0 0.0
        %428 = vmatprep.subr.mxu0 0.0
        %429 = vmatpush1.msra.mxu0 0.0
        %430 = vmatprep.subr.mxu0 0.0
        %431 = vmatpush1.msra.mxu0 0.0
        %432 = vmatprep.subr.mxu0 0.0
        %433 = vmatpush1.msra.mxu0 0.0
        %434 = vmatprep.subr.mxu0 0.0
        %435 = vmatpush1.msra.mxu0 0.0
        %436 = vmatprep.subr.mxu0 0.0
        %437 = vmatpush1.msra.mxu0 0.0
        %438 = vmatprep.subr.mxu0 0.0
        %439 = vmatpush1.msra.mxu0 0.0
        %440 = vmatprep.subr.mxu0 0.0
        %441 = vmatpush1.msra.mxu0 0.0
        %442 = vmatprep.subr.mxu0 0.0
        %443 = vmatpush1.msra.mxu0 0.0
        %444 = vmatprep.subr.mxu0 0.0
        %445 = vmatpush1.msra.mxu0 0.0
        %446 = vmatprep.subr.mxu0 0.0
        %447 = vmatpush1.msra.mxu0 0.0
        %448 = vmatprep.subr.mxu0 0.0
        %449 = vmatpush1.msra.mxu0 0.0
        %450 = vmatprep.subr.mxu0 0.0
        %451 = vmatpush1.msra.mxu0 0.0
        %452 = vmatprep.subr.mxu0 0.0
        %453 = vmatpush1.msra.mxu0 0.0
        %454 = vmatprep.subr.mxu0 0.0
        %455 = vmatpush1.msra.mxu0 0.0
        %456 = vmatprep.subr.mxu0 0.0
        %457 = vmatpush1.msra.mxu0 0.0
        %458 = vmatprep.subr.mxu0 0.0
        %459 = vmatpush1.msra.mxu0 0.0
        %460 = vmatprep.subr.mxu0 0.0
        %461 = vmatpush1.msra.mxu0 0.0
        %462 = vmatprep.subr.mxu0 0.0
        %463 = vmatpush1.msra.mxu0 0.0
        %464 = vmatprep.subr.mxu0 0.0
        %465 = vmatpush1.msra.mxu0 0.0
        %466 = vmatprep.subr.mxu0 0.0
        %467 = vmatpush1.msra.mxu0 0.0
        %468 = vmatprep.subr.mxu0 0.0
        %469 = vmatpush1.msra.mxu0 0.0
        %470 = vmatprep.subr.mxu0 0.0
        %471 = vmatpush1.msra.mxu0 0.0
        %472 = vmatprep.subr.mxu0 0.0
        %473 = vmatpush1.msra.mxu0 0.0
        %474 = vmatprep.subr.mxu0 0.0
        %475 = vmatpush1.msra.mxu0 0.0
        %476 = vmatprep.subr.mxu0 0.0
        %477 = vmatpush1.msra.mxu0 0.0
        %478 = vmatprep.subr.mxu0 0.0
        %479 = vmatpush1.msra.mxu0 0.0
        %480 = vmatprep.mubr.f32.mxu0 0.0
        %481 = vmatmul.mubr.f32.gmra.mrb[0].mxu0 %v337
        %v482 = vpop.f32.mrb[0].mxu0
        %v483 = vadd.f32 0.0, %v482
        %v484 = vpop.f32.mrb[0].mxu0
        %485 = vdwg.mxu0
        %486 = vst.msk [vmem:[%s322] sm:$0xff] %vm409, %v483
        %s487 = scalar_lea.vmem %s290, 64 [#allocation5]
        %v488 = vld [vmem:[%s487] sm:$0xff]
        %v489 = vld [vmem:[%s487 + $0x8] sm:$0xff]
        %v490 = vld [vmem:[%s487 + $0x10] sm:$0xff]
        %v491 = vld [vmem:[%s487 + $0x18] sm:$0xff]
        %492 = vmatprep.subr.mxu0 0.0
        %493 = vmatpush1.msra.mxu0 %v488
        %494 = vmatprep.subr.mxu0 0.0
        %495 = vmatpush1.msra.mxu0 %v489
        %496 = vmatprep.subr.mxu0 0.0
        %497 = vmatpush1.msra.mxu0 %v490
        %498 = vmatprep.subr.mxu0 0.0
        %499 = vmatpush1.msra.mxu0 %v491
        %500 = vmatprep.subr.mxu0 0.0
        %501 = vmatpush1.msra.mxu0 0.0
        %502 = vmatprep.subr.mxu0 0.0
        %503 = vmatpush1.msra.mxu0 0.0
        %504 = vmatprep.subr.mxu0 0.0
        %505 = vmatpush1.msra.mxu0 0.0
        %506 = vmatprep.subr.mxu0 0.0
        %507 = vmatpush1.msra.mxu0 0.0
        %508 = vmatprep.subr.mxu0 0.0
        %509 = vmatpush1.msra.mxu0 0.0
        %510 = vmatprep.subr.mxu0 0.0
        %511 = vmatpush1.msra.mxu0 0.0
        %512 = vmatprep.subr.mxu0 0.0
        %513 = vmatpush1.msra.mxu0 0.0
        %514 = vmatprep.subr.mxu0 0.0
        %515 = vmatpush1.msra.mxu0 0.0
        %516 = vmatprep.subr.mxu0 0.0
        %517 = vmatpush1.msra.mxu0 0.0
        %518 = vmatprep.subr.mxu0 0.0
        %519 = vmatpush1.msra.mxu0 0.0
        %520 = vmatprep.subr.mxu0 0.0
        %521 = vmatpush1.msra.mxu0 0.0
        %522 = vmatprep.subr.mxu0 0.0
        %523 = vmatpush1.msra.mxu0 0.0
        %524 = vmatprep.subr.mxu0 0.0
        %525 = vmatpush1.msra.mxu0 0.0
        %526 = vmatprep.subr.mxu0 0.0
        %527 = vmatpush1.msra.mxu0 0.0
        %528 = vmatprep.subr.mxu0 0.0
        %529 = vmatpush1.msra.mxu0 0.0
        %530 = vmatprep.subr.mxu0 0.0
        %531 = vmatpush1.msra.mxu0 0.0
        %532 = vmatprep.subr.mxu0 0.0
        %533 = vmatpush1.msra.mxu0 0.0
        %534 = vmatprep.subr.mxu0 0.0
        %535 = vmatpush1.msra.mxu0 0.0
        %536 = vmatprep.subr.mxu0 0.0
        %537 = vmatpush1.msra.mxu0 0.0
        %538 = vmatprep.subr.mxu0 0.0
        %539 = vmatpush1.msra.mxu0 0.0
        %540 = vmatprep.subr.mxu0 0.0
        %541 = vmatpush1.msra.mxu0 0.0
        %542 = vmatprep.subr.mxu0 0.0
        %543 = vmatpush1.msra.mxu0 0.0
        %544 = vmatprep.subr.mxu0 0.0
        %545 = vmatpush1.msra.mxu0 0.0
        %546 = vmatprep.subr.mxu0 0.0
        %547 = vmatpush1.msra.mxu0 0.0
        %548 = vmatprep.subr.mxu0 0.0
        %549 = vmatpush1.msra.mxu0 0.0
        %550 = vmatprep.subr.mxu0 0.0
        %551 = vmatpush1.msra.mxu0 0.0
        %552 = vmatprep.subr.mxu0 0.0
        %553 = vmatpush1.msra.mxu0 0.0
        %554 = vmatprep.subr.mxu0 0.0
        %555 = vmatpush1.msra.mxu0 0.0
        %556 = vmatprep.mubr.f32.mxu0 0.0
        %557 = vmatmul.mubr.f32.gmra.mrb[0].mxu0 %v337
        %v558 = vpop.f32.mrb[0].mxu0
        %v559 = vadd.f32 0.0, %v558
        %v560 = vpop.f32.mrb[0].mxu0
        %561 = vdwg.mxu0
        %562 = vst.msk [vmem:[%s329] sm:$0xff] %vm409, %v559
        %s563 = sand.u32 %s113, 1
        %s564 = scalar_lea.sflag [#allocation4], %s563
        %s565 = sand.u32 %s113, 1
        %s566 = smul.addr %s565, 8
        %s567 = scalar_lea.vmem [#allocation7], %s566
        %s568 = sand.u32 %s28, 1
        %s569 = scalar_lea.sflag [#allocation9], %s568
        %s570 = sand.u32 %s143, 1
        %s571 = smul.addr %s570, 8
        %s572 = scalar_lea.vmem [#allocation8], %s571
        %s573 = sand.u32 %s28, 1
        %s574 = scalar_lea.sflag [#allocation9], %s573
        %s575 = sand.u32 %s173, 1
        %s576 = smul.addr %s575, 8
        %s577 = scalar_lea.vmem [#allocation10], %s576
        // Predicated region
        $region37: #{tpu_custom_call.1} parent=27 // pred_check
          %p578 = pneg %p123
        $region38: #{tpu_custom_call.1} parent=27 // pred_check_branch
          %580 = sbr.rel (%p578) target = $region40
        $region39: #{tpu_custom_call.1} parent=27 // pred_region
          %s582 = ssub.s32 128, 128
          %583 = vsyncadd %s564, %s582
          %s584 = sadd.s32 %s35, %s34
          %s585 = smul.addr %s33, 4
          %s586 = sadd.s32 %s584, %s585
          %s587 = smul.addr %s586, 128
          %s588 = scalar_lea.hbm %s2, %s587
          %s590 = sshll.u32 %s567, 4
          %s591 = int_to_ptr.vmem [resolvable:$true] %s590
          %593 = dma.vmem_to_hbm [thread:$0]  %s591, 128, %s588, %s564
        $region40: #{tpu_custom_call.1} parent=27 // pred_fallthru
          _
        // Predicated region
        $region41: #{tpu_custom_call.1} parent=27 // pred_check
          %p594 = pneg %p153
        $region42: #{tpu_custom_call.1} parent=27 // pred_check_branch
          %596 = sbr.rel (%p594) target = $region44
        $region43: #{tpu_custom_call.1} parent=27 // pred_region
          %s598 = ssub.s32 128, 128
          %599 = vsyncadd %s569, %s598
          %s600 = sadd.s32 %s35, %s34
          %s601 = smul.addr %s33, 4
          %s602 = sadd.s32 %s600, %s601
          %s603 = smul.addr %s602, 128
          %s604 = scalar_lea.hbm %s3, %s603
          %s606 = sshll.u32 %s572, 4
          %s607 = int_to_ptr.vmem [resolvable:$true] %s606
          %609 = dma.vmem_to_hbm [thread:$0]  %s607, 128, %s604, %s569
        $region44: #{tpu_custom_call.1} parent=27 // pred_fallthru
          _
        // Predicated region
        $region45: #{tpu_custom_call.1} parent=27 // pred_check
          %p610 = pneg %p183
        $region46: #{tpu_custom_call.1} parent=27 // pred_check_branch
          %612 = sbr.rel (%p610) target = $region48
        $region47: #{tpu_custom_call.1} parent=27 // pred_region
          %s614 = ssub.s32 128, 128
          %615 = vsyncadd %s574, %s614
          %s616 = sadd.s32 %s35, %s34
          %s617 = smul.addr %s33, 4
          %s618 = sadd.s32 %s616, %s617
          %s619 = smul.addr %s618, 128
          %s620 = scalar_lea.hbm %s4, %s619
          %s622 = sshll.u32 %s577, 4
          %s623 = int_to_ptr.vmem [resolvable:$true] %s622
          %625 = dma.vmem_to_hbm [thread:$0]  %s623, 128, %s620, %s574
        $region48: #{tpu_custom_call.1} parent=27 // pred_fallthru
          _
      $region28: #{tpu_custom_call.1} parent=5 // pred_fallthru
        _
      %p626 = scmp.le.s32.totalorder 2, %s23
      // Predicated region
      $region49: #{tpu_custom_call.1} parent=5 // pred_check
        %p627 = pneg %p626
      $region50: #{tpu_custom_call.1} parent=5 // pred_check_branch
        %629 = sbr.rel (%p627) target = $region52
      $region51: #{tpu_custom_call.1} parent=5 // pred_region
        %s630 = ssub.s32 %s23, 2
        // Predicated region
        $region53: #{tpu_custom_call.1} parent=51 // pred_check
          %p631 = pneg %p129
        $region54: #{tpu_custom_call.1} parent=51 // pred_check_branch
          %633 = sbr.rel (%p631) target = $region56
        $region55: #{tpu_custom_call.1} parent=51 // pred_region
          %s634 = sand.u32 %s114, 1
          %s635 = scalar_lea.sflag [#allocation4], %s634
          %s636 = sand.u32 %s114, 1
          %s637 = smul.addr %s636, 8
          %s638 = scalar_lea.vmem [#allocation7], %s637
          %639 = dma.done %s635, 128
        $region56: #{tpu_custom_call.1} parent=51 // pred_fallthru
          _
        // Predicated region
        $region57: #{tpu_custom_call.1} parent=51 // pred_check
          %p640 = pneg %p159
        $region58: #{tpu_custom_call.1} parent=51 // pred_check_branch
          %642 = sbr.rel (%p640) target = $region60
        $region59: #{tpu_custom_call.1} parent=51 // pred_region
          %s643 = sand.u32 %s29, 1
          %s644 = scalar_lea.sflag [#allocation9], %s643
          %s645 = sand.u32 %s144, 1
          %s646 = smul.addr %s645, 8
          %s647 = scalar_lea.vmem [#allocation8], %s646
          %648 = dma.done %s644, 128
        $region60: #{tpu_custom_call.1} parent=51 // pred_fallthru
          _
        // Predicated region
        $region61: #{tpu_custom_call.1} parent=51 // pred_check
          %p649 = pneg %p189
        $region62: #{tpu_custom_call.1} parent=51 // pred_check_branch
          %651 = sbr.rel (%p649) target = $region64
        $region63: #{tpu_custom_call.1} parent=51 // pred_region
          %s652 = sand.u32 %s29, 1
          %s653 = scalar_lea.sflag [#allocation9], %s652
          %s654 = sand.u32 %s174, 1
          %s655 = smul.addr %s654, 8
          %s656 = scalar_lea.vmem [#allocation10], %s655
          %657 = dma.done %s653, 128
        $region64: #{tpu_custom_call.1} parent=51 // pred_fallthru
          _
      $region52: #{tpu_custom_call.1} parent=5 // pred_fallthru
        _
    $region6: #{tpu_custom_call.1} parent=1 // loop_footer
      %s27 = sadd.s32 1, %s23
    $region7: #{tpu_custom_call.1} parent=1 // loop_footer_branch
      %22 = sbr.rel target = $region3
    $region8: #{tpu_custom_call.1} parent=1 // loop_exit
      _
    %658 = vsyncpa [#allocation3], 1
    %s659 = scalar_lea.sflag [#allocation3], 1
    %660 = vsyncpa %s659, 1
    %661 = vsyncpa [#allocation6], 1
    %s662 = scalar_lea.sflag [#allocation6], 1
    %663 = vsyncpa %s662, 1
    %664 = vsyncpa [#allocation4], 1
    %s665 = scalar_lea.sflag [#allocation4], 1
    %666 = vsyncpa %s665, 1
    %667 = vsyncpa [#allocation9], 1
    %s668 = scalar_lea.sflag [#allocation9], 1
    %669 = vsyncpa %s668, 1

</llo_original>
